<compile_context>
chip_gen: v5e
topology: v5e:2x2
jax: 0.10.0
libtpu: 0.0.40
codegen_flags: <defaults>
</compile_context>

<pallas_src>
import functools

import jax
import jax.numpy as jnp
from jax.experimental import pallas as pl
from jax.experimental.pallas import tpu as pltpu

EPS = 1e-5  # nn.BatchNorm2d default

# Maps e = (pool_phase + tap - 1) in {-1,0,1,2} to (input phase, half-res shift).
_PHASE_SHIFT = {-1: (1, -1), 0: (0, 0), 1: (1, 0), 2: (0, 1)}

# Does pltpu.roll rotate like jnp.roll?  Refined at runtime by the probe below.
_ROLL_LIKE_JNP = True


def _roll_probe_kernel(x_ref, o_ref):
    o_ref[...] = pltpu.roll(x_ref[...], 3, axis=1)


def _detect_roll_convention():
    """Probe pltpu.roll's rotation direction once so tap shifts are sign-proof."""
    global _ROLL_LIKE_JNP
    x = jnp.arange(8 * 256, dtype=jnp.float32).reshape(8, 256)
    y = pl.pallas_call(
        _roll_probe_kernel,
        out_shape=jax.ShapeDtypeStruct((8, 256), jnp.float32))(x)
    if bool(jnp.array_equal(y, jnp.roll(x, 3, axis=1))):
        _ROLL_LIKE_JNP = True
    elif bool(jnp.array_equal(y, jnp.roll(x, -3, axis=1))):
        _ROLL_LIKE_JNP = False
    else:
        raise RuntimeError("pltpu.roll probe matched neither rotation direction")


# ----------------------------------------------------------------------------
# Shared epilogue: BatchNorm (batch stats, two-pass/centered variance) + affine
# + ReLU + 2x2 max-pool (= max over the 4 pool-phase slabs), lane-dense store.
# ----------------------------------------------------------------------------
def _bn_relu_pool_store(acc_ref, sums, g_ref, b_ref, o_ref, m4):
    inv = 1.0 / float(4 * m4)                       # 1 / (N*H*W)
    mean = (sums[0] + sums[1] + sums[2] + sums[3]) * inv
    ssq = None
    for q in range(4):
        d = acc_ref[q] - mean
        s = jnp.sum(d * d, axis=-1, keepdims=True)
        ssq = s if ssq is None else ssq + s
    var = ssq * inv
    scale = g_ref[...] * jax.lax.rsqrt(var + EPS)
    shift = b_ref[...] - mean * scale
    m = acc_ref[0] * scale + shift
    for q in range(1, 4):
        m = jnp.maximum(m, acc_ref[q] * scale + shift)
    o_ref[...] = jnp.maximum(m, 0.0).astype(o_ref.dtype)


# ----------------------------------------------------------------------------
# Fused conv block kernel with IN-KERNEL im2col (layers whose M4 >= 128).
#
#   ph_ref : (4, cin, m4) bf16   phase planes ph[2*qy+qx][ci, (n,i,j)] =
#                                act[ci, n, 2*i+qy, 2*j+qx], m4 = N*hh*wh lanes.
#   w_ref  : (cout, 9*cin)       conv weight, k order = (dy, dx, ci).
#   pat_ref: (9*cin, m4)  VMEM   im2col slab, rebuilt per pool position.
#   acc_ref: (4, cout, m4) f32   conv output, one slab per pool position.
#   o_ref  : (cout, m4)   bf16   pooled activation.
# ----------------------------------------------------------------------------
def _conv_bn_pool_kernel(ph_ref, w_ref, g_ref, b_ref, o_ref, pat_ref, acc_ref,
                         *, cin, hh, wh, m4, roll_like_jnp):
    # Boundary-validity masks for the +/-1 half-resolution shifts.
    shift_w = wh.bit_length() - 1
    lane = jax.lax.broadcasted_iota(jnp.int32, (1, m4), 1)
    col = lane & (wh - 1)
    row = (lane >> shift_w) & (hh - 1)
    col_ok = {0: None, 1: col < (wh - 1), -1: col > 0}
    row_ok = {0: None, 1: row < (hh - 1), -1: row > 0}

    wm = w_ref[...]
    sums = []
    for py in range(2):
        for px in range(2):
            # Build the (9*cin, m4) patch slab for pool position (py, px).
            for dy in range(3):
                qy, sy = _PHASE_SHIFT[py + dy - 1]
                for dx in range(3):
                    qx, sx = _PHASE_SHIFT[px + dx - 1]
                    plane = ph_ref[2 * qy + qx]            # (cin, m4) bf16
                    k = sy * wh + sx                        # lane read-ahead
                    if k != 0:
                        amount = (-k) % m4 if roll_like_jnp else k % m4
                        plane = pltpu.roll(plane, amount, axis=1)
                    mask = row_ok[sy]
                    if mask is None:
                        mask = col_ok[sx]
                    elif col_ok[sx] is not None:
                        mask = jnp.logical_and(mask, col_ok[sx])
                    if mask is not None:
                        plane = jnp.where(mask, plane, jnp.zeros_like(plane))
                    t = 3 * dy + dx
                    pat_ref[t * cin:(t + 1) * cin, :] = plane.astype(pat_ref.dtype)
            acc = jnp.dot(wm, pat_ref[...], preferred_element_type=jnp.float32)
            acc_ref[2 * py + px] = acc
            # Per-slab channel sums taken while the slab is hot (saves a pass).
            sums.append(jnp.sum(acc, axis=-1, keepdims=True))
    _bn_relu_pool_store(acc_ref, sums, g_ref, b_ref, o_ref, m4)


# Tiny tail-layer variant: pre-built patch slabs (M4 < 128 -> negligible bytes).
def _conv_bn_pool_prebuilt_kernel(p_ref, w_ref, g_ref, b_ref, o_ref, acc_ref, *, m4):
    wm = w_ref[...]
    sums = []
    for q in range(4):
        acc = jnp.dot(wm, p_ref[q], preferred_element_type=jnp.float32)
        acc_ref[q] = acc
        sums.append(jnp.sum(acc, axis=-1, keepdims=True))
    _bn_relu_pool_store(acc_ref, sums, g_ref, b_ref, o_ref, m4)


def _build_pool_ordered_patches(act):
    """act: (Cin, N, H, W) -> (4, 9*Cin, N*(H//2)*(W//2)) patch slabs (bf16)."""
    C, N, H, W = act.shape
    Hh, Wh = H // 2, W // 2
    xp = jnp.pad(act, ((0, 0), (0, 0), (1, 1), (1, 1)))
    slabs = []
    for py in range(2):
        for px in range(2):
            taps = []
            for dy in range(3):
                for dx in range(3):
                    s = xp[:, :, py + dy:py + dy + H:2, px + dx:px + dx + W:2]
                    taps.append(s.reshape(C, N * Hh * Wh))
            slabs.append(jnp.concatenate(taps, axis=0))      # (9*C, M4)
    return jnp.stack(slabs, axis=0)                           # (4, 9*C, M4)


def conv_block(act, w_oihw, gamma, beta):
    """Conv2d(3x3,pad=1,no bias)+BatchNorm2d(batch stats)+ReLU+MaxPool(2,2) block.

    act: (Cin, N, H, W) bf16   ->   (Cout, N, H//2, W//2) bf16
    """
    C, N, H, W = act.shape
    assert H % 2 == 0 and W % 2 == 0
    Cout = w_oihw.shape[0]
    Hh, Wh = H // 2, W // 2
    M4 = N * Hh * Wh
    K = 9 * C
    g = gamma.reshape(Cout, 1).astype(jnp.float32)
    b = beta.reshape(Cout, 1).astype(jnp.float32)
    cparams = pltpu.CompilerParams(dimension_semantics=("arbitrary",),
                                   vmem_limit_bytes=32 * 1024 * 1024)

    if M4 >= 128 and (Wh & (Wh - 1)) == 0 and (Hh & (Hh - 1)) == 0:
        # In-kernel im2col path: only the raw activation crosses HBM.
        pat_dtype = jnp.bfloat16 if C % 16 == 0 else jnp.float32   # layer 1: f32
        phases = (act.reshape(C, N, Hh, 2, Wh, 2)
                  .transpose(3, 5, 0, 1, 2, 4)
                  .reshape(4, C, M4).astype(jnp.bfloat16))
        wm = jnp.transpose(w_oihw, (0, 2, 3, 1)).reshape(Cout, K).astype(pat_dtype)
        kern = functools.partial(_conv_bn_pool_kernel, cin=C, hh=Hh, wh=Wh, m4=M4,
                                 roll_like_jnp=_ROLL_LIKE_JNP)
        out = pl.pallas_call(
            kern,
            grid=(1,),
            in_specs=[
                pl.BlockSpec((4, C, M4), lambda i: (0, 0, 0)),
                pl.BlockSpec((Cout, K), lambda i: (0, 0)),
                pl.BlockSpec((Cout, 1), lambda i: (0, 0)),
                pl.BlockSpec((Cout, 1), lambda i: (0, 0)),
            ],
            out_specs=pl.BlockSpec((Cout, M4), lambda i: (0, 0)),
            out_shape=jax.ShapeDtypeStruct((Cout, M4), jnp.bfloat16),
            scratch_shapes=[pltpu.VMEM((K, M4), pat_dtype),
                            pltpu.VMEM((4, Cout, M4), jnp.float32)],
            compiler_params=cparams,
        )(phases, wm, g, b)
    else:
        # Tiny tail layer: patch slabs built in XLA glue (negligible HBM traffic).
        patches = _build_pool_ordered_patches(act)
        wm = jnp.transpose(w_oihw, (0, 2, 3, 1)).reshape(Cout, K).astype(jnp.bfloat16)
        out = pl.pallas_call(
            functools.partial(_conv_bn_pool_prebuilt_kernel, m4=M4),
            grid=(1,),
            in_specs=[
                pl.BlockSpec((4, K, M4), lambda i: (0, 0, 0)),
                pl.BlockSpec((Cout, K), lambda i: (0, 0)),
                pl.BlockSpec((Cout, 1), lambda i: (0, 0)),
                pl.BlockSpec((Cout, 1), lambda i: (0, 0)),
            ],
            out_specs=pl.BlockSpec((Cout, M4), lambda i: (0, 0)),
            out_shape=jax.ShapeDtypeStruct((Cout, M4), jnp.bfloat16),
            scratch_shapes=[pltpu.VMEM((4, Cout, M4), jnp.float32)],
            compiler_params=cparams,
        )(patches, wm, g, b)
    return out.reshape(Cout, N, Hh, Wh)


# ----------------------------------------------------------------------------
# Fused dense head (fc1 -> fc2 -> actor/critic).  bf16 weights, f32 accumulate,
# actor+critic fused into one matmul (columns split in the wrapper).
# ----------------------------------------------------------------------------
def _head_kernel(x1_ref, num_ref, w1a_ref, b1a_ref, w1b_ref, b1b_ref,
                 w2v_ref, w2n_ref, b2_ref, wac_ref, bac_ref, out_ref):
    h = jnp.maximum(
        jnp.dot(num_ref[...], w1a_ref[...], preferred_element_type=jnp.float32)
        + b1a_ref[...], 0.0)
    x2 = jnp.maximum(
        jnp.dot(h, w1b_ref[...], preferred_element_type=jnp.float32)
        + b1b_ref[...], 0.0)
    # concat([x1, x2]) @ W2  ==  x1 @ W2_vis + x2 @ W2_num
    x = (jnp.dot(x1_ref[...], w2v_ref[...], preferred_element_type=jnp.float32)
         + jnp.dot(x2.astype(jnp.bfloat16), w2n_ref[...],
                   preferred_element_type=jnp.float32)
         + b2_ref[...])
    x = jnp.maximum(x, 0.0)
    out_ref[...] = (jnp.dot(x.astype(jnp.bfloat16), wac_ref[...],
                            preferred_element_type=jnp.float32) + bac_ref[...])


def head(x1, num, p):
    N = x1.shape[0]
    A = p["wa"].shape[1]
    wac = jnp.concatenate([p["wa"], p["wc"]], axis=1).astype(jnp.bfloat16)
    bac = jnp.concatenate([p["ba"], p["bc"]], axis=1).astype(jnp.float32)
    out = pl.pallas_call(
        _head_kernel,
        out_shape=jax.ShapeDtypeStruct((N, A + 1), jnp.float32),
    )(x1.astype(jnp.bfloat16), num.astype(jnp.float32),
      p["w1a"], p["b1a"], p["w1b"], p["b1b"],
      p["w2v"].astype(jnp.bfloat16), p["w2n"].astype(jnp.bfloat16), p["b2"],
      wac, bac)
    return out[:, :A], out[:, A:]


# ----------------------------------------------------------------------------
# Forward pass.
# ----------------------------------------------------------------------------
def actor_critic_forward(params, visual_nchw, numerical):
    # Channels-first (C, N, H, W) layout end-to-end; bf16 activation stream.
    x = jnp.transpose(visual_nchw, (1, 0, 2, 3)).astype(jnp.bfloat16)
    for i in range(6):
        x = conv_block(x, params["conv_w"][i], params["bn_gamma"][i], params["bn_beta"][i])
    C6, N, H6, W6 = x.shape                                  # (64, N, 4, 4)
    # torch flattens NCHW: per-sample order (c, h, w).
    x1 = jnp.transpose(x.reshape(C6, N, H6 * W6), (1, 0, 2)).reshape(N, C6 * H6 * W6)
    return head(x1, numerical.astype(jnp.float32), params)


# ----------------------------------------------------------------------------
# Deterministic parameter init (synthetic, matches module's shapes).
# ----------------------------------------------------------------------------
def init_params(key, in_channels, num_actions):
    chans = [(in_channels, 16), (16, 16), (16, 32), (32, 32), (32, 64), (64, 64)]
    keys = iter(jax.random.split(key, 32))
    conv_w, gammas, betas = [], [], []
    for cin, cout in chans:
        conv_w.append(jax.random.normal(next(keys), (cout, cin, 3, 3), jnp.float32)
                      * (2.0 / (9 * cin)) ** 0.5)
        gammas.append(1.0 + 0.1 * jax.random.normal(next(keys), (cout,), jnp.float32))
        betas.append(0.1 * jax.random.normal(next(keys), (cout,), jnp.float32))

    def lin(k, fan_in, fan_out):
        kw, kb = jax.random.split(k)
        w = jax.random.normal(kw, (fan_in, fan_out), jnp.float32) * (1.0 / fan_in) ** 0.5
        b = 0.01 * jax.random.normal(kb, (1, fan_out), jnp.float32)
        return w, b

    w1a, b1a = lin(next(keys), 5, 128)
    w1b, b1b = lin(next(keys), 128, 32)
    w2, b2 = lin(next(keys), 1056, 256)
    wa, ba = lin(next(keys), 256, num_actions)
    wc, bc = lin(next(keys), 256, 1)
    return dict(conv_w=conv_w, bn_gamma=gammas, bn_beta=betas,
                w1a=w1a, b1a=b1a, w1b=w1b, b1b=b1b,
                w2v=w2[:1024], w2n=w2[1024:], b2=b2,
                wa=wa, ba=ba, wc=wc, bc=bc)


# ----------------------------------------------------------------------------
# Pure-JAX f32 reference (same math as the PyTorch module in training mode).
# ----------------------------------------------------------------------------
def reference_forward(params, visual_nchw, numerical):
    x = visual_nchw.astype(jnp.float32)
    for i in range(6):
        w = params["conv_w"][i]
        x = jax.lax.conv_general_dilated(x, w, (1, 1), ((1, 1), (1, 1)),
                                         dimension_numbers=("NCHW", "OIHW", "NCHW"))
        mean = jnp.mean(x, axis=(0, 2, 3), keepdims=True)
        var = jnp.var(x, axis=(0, 2, 3), keepdims=True)
        g = params["bn_gamma"][i].reshape(1, -1, 1, 1)
        b = params["bn_beta"][i].reshape(1, -1, 1, 1)
        x = jnp.maximum((x - mean) * jax.lax.rsqrt(var + EPS) * g + b, 0.0)
        x = jax.lax.reduce_window(x, -jnp.inf, jax.lax.max,
                                  (1, 1, 2, 2), (1, 1, 2, 2), "VALID")
    x1 = x.reshape(x.shape[0], -1)
    h = jnp.maximum(numerical @ params["w1a"] + params["b1a"], 0.0)
    x2 = jnp.maximum(h @ params["w1b"] + params["b1b"], 0.0)
    xx = jnp.maximum(x1 @ params["w2v"] + x2 @ params["w2n"] + params["b2"], 0.0)
    return xx @ params["wa"] + params["ba"], xx @ params["wc"] + params["bc"]


if __name__ == "__main__":
    _detect_roll_convention()   # must run before tracing the conv kernels

    key = jax.random.PRNGKey(0)
    kp, kv, kn = jax.random.split(key, 3)
    in_channels, num_actions, batch = 3, 8, 2
    # fc2 expects 1056 = 64*4*4 conv features + 32, which pins the visual
    # resolution to 256x256 (smallest spatial size consistent with the module).
    visual = jax.random.normal(kv, (batch, in_channels, 256, 256), jnp.float32)
    numerical = jax.random.normal(kn, (batch, 5), jnp.float32)
    params = init_params(kp, in_channels, num_actions)

    actor, critic = jax.jit(actor_critic_forward)(params, visual, numerical)
    jax.block_until_ready((actor, critic))

    assert actor.shape == (batch, num_actions) and critic.shape == (batch, 1)
    assert bool(jnp.all(jnp.isfinite(actor))) and bool(jnp.all(jnp.isfinite(critic)))
    # bf16 matmul operands / activation stream (per perf guidance) -> compare to
    # the f32 reference with a few-percent tolerance.
    ref_a, ref_c = reference_forward(params, visual, numerical)
    err_a = float(jnp.max(jnp.abs(actor - ref_a)))
    err_c = float(jnp.max(jnp.abs(critic - ref_c)))
    assert jnp.allclose(actor, ref_a, atol=4e-2, rtol=4e-2), err_a
    assert jnp.allclose(critic, ref_c, atol=4e-2, rtol=4e-2), err_c
    print("KERNEL_OK")
</pallas_src>

<mosaic_0001>
module attributes {stable_mosaic.version = 11 : i64} {
  func.func @_roll_probe_kernel(%arg0: memref<8x256xf32, #tpu.memory_space<vmem>>, %arg1: memref<8x256xf32, #tpu.memory_space<vmem>>) attributes {dimension_semantics = [], scalar_prefetch = 0 : i64, scratch_operands = 0 : i64, tpu.core_type = #tpu.core_type<tc>} {
    %c0 = arith.constant 0 : index
    %c0_0 = arith.constant 0 : index
    %0 = vector.load %arg0[%c0, %c0_0] : memref<8x256xf32, #tpu.memory_space<vmem>>, vector<8x256xf32>
    %c3_i32 = arith.constant 3 : i32
    %1 = tpu.dynamic_rotate %0 by %c3_i32 dim 1 : vector<8x256xf32>, i32 -> vector<8x256xf32>
    %c0_1 = arith.constant 0 : index
    %c0_2 = arith.constant 0 : index
    %2 = vector.load %arg1[%c0_1, %c0_2] : memref<8x256xf32, #tpu.memory_space<vmem>>, vector<8x256xf32>
    tpu.vector_store %arg1[%c0_1, %c0_2], %1 {strides = array<i32>} : memref<8x256xf32, #tpu.memory_space<vmem>>, vector<8x256xf32>,
    return
  }
}

</mosaic_0001>

<llo_original>
// kernel: tpu_custom_call.1
$region0: #{tpu_custom_call.1}
  #allocation0 [shape = 'u32[]', space=smem, size = 0x4, offset = 0x4, fixed_abs, tag = 'smem constant byte address 0x4 - core index']
  #allocation1 [shape = 'u32[72,128]{1,0:T(1,128)}', space=vmem, size = 0x9000, scoped, tag = 'internal scratch']
  %s0 = inlined_call_operand.hbm [shape: f32[8,256], index: 0, kind: input, shape index: {}]
  %s1 = inlined_call_operand.hbm [shape: f32[8,256], index: 1, kind: output, shape index: {}]
  %s2 = sld [smem:[#allocation0]]
  $region18: #{tpu_custom_call.1} parent=0
    _
  %s4 = ssub.s32 1, %s2
  %s5 = scalar_select 0, %s4, %s2
  $region1: #{tpu_custom_call.1} parent=0
    #allocation2 [shape = 'u8[8192]{0}', space=vmem, size = 0x2000, scoped, tag = 'input window, operand 0, single buffered']
    #allocation3 [shape = 's32[1]{0}', space=sflag, size = 0x4, scoped, tag = 'scoped memory for tpu_custom_call.1']
    #allocation4 [shape = 's32[1]{0}', space=sflag, size = 0x4, scoped, tag = 'scoped memory for tpu_custom_call.1']
    #allocation5 [shape = 'u8[8192]{0}', space=vmem, size = 0x2000, scoped, tag = 'output window, operand 0, single buffered']
    %6 = vsyncpa [#allocation3], 0
    %7 = vsyncpa [#allocation4], 0
    // Predicated region
    $region2: #{tpu_custom_call.1} parent=1 // pred_check
      _
    $region3: #{tpu_custom_call.1} parent=1 // pred_check_branch
      %9 = sbr.rel (0) target = $region5
    $region4: #{tpu_custom_call.1} parent=1 // pred_region
      %11 = vsyncadd [#allocation3], 0
      %s13 = sshll.u32 %s0, 4
      %s14 = int_to_ptr.hbm [resolvable:$true] %s13
      %s15 = sshll.u32 [#allocation2], 4
      %s16 = int_to_ptr.vmem [resolvable:$true] %s15
      %18 = dma.hbm_to_vmem [thread:$0]  %s14, 256, %s16, [#allocation3]
    $region5: #{tpu_custom_call.1} parent=1 // pred_fallthru
      _
    // Predicated region
    $region6: #{tpu_custom_call.1} parent=1 // pred_check
      _
    $region7: #{tpu_custom_call.1} parent=1 // pred_check_branch
      %20 = sbr.rel (0) target = $region9
    $region8: #{tpu_custom_call.1} parent=1 // pred_region
      %22 = dma.done [#allocation3], 256
    $region9: #{tpu_custom_call.1} parent=1 // pred_fallthru
      _
    %v23 = vld [vmem:[#allocation2] sm:$0xff]
    %v24 = vld [vmem:[#allocation2 + $0x8] sm:$0xff]
    %25 = vrot.lane.b32.xlu0 %v23, 3
    %v26 = vpop.permute.xlu0 %25
    %27 = vrot.lane.b32.xlu0 %v24, 3
    %v28 = vpop.permute.xlu0 %27
    %v29 = vlaneseq
    %v30 = vand.u32 %v29, 127
    %vm31 = vcmp.lt.s32.totalorder %v30, 3
    %v32 = vsel %vm31, %v26, %v28
    %v33 = vsel %vm31, %v28, %v26
    %34 = vst [vmem:[#allocation5] sm:$0xff] %v33
    %35 = vst [vmem:[#allocation5 + $0x8] sm:$0xff] %v32
    // Predicated region
    $region10: #{tpu_custom_call.1} parent=1 // pred_check
      _
    $region11: #{tpu_custom_call.1} parent=1 // pred_check_branch
      %37 = sbr.rel (0) target = $region13
    $region12: #{tpu_custom_call.1} parent=1 // pred_region
      %39 = vsyncadd [#allocation4], 0
      %s41 = sshll.u32 [#allocation5], 4
      %s42 = int_to_ptr.vmem [resolvable:$true] %s41
      %s43 = sshll.u32 %s1, 4
      %s44 = int_to_ptr.hbm [resolvable:$true] %s43
      %46 = dma.vmem_to_hbm [thread:$0]  %s42, 256, %s44, [#allocation4]
    $region13: #{tpu_custom_call.1} parent=1 // pred_fallthru
      _
    // Predicated region
    $region14: #{tpu_custom_call.1} parent=1 // pred_check
      _
    $region15: #{tpu_custom_call.1} parent=1 // pred_check_branch
      %48 = sbr.rel (0) target = $region17
    $region16: #{tpu_custom_call.1} parent=1 // pred_region
      %50 = dma.done [#allocation4], 256
    $region17: #{tpu_custom_call.1} parent=1 // pred_fallthru
      _
    %51 = vsyncpa [#allocation3], 1
    %52 = vsyncpa [#allocation4], 1

</llo_original>
